<compile_context>
chip_gen: v5e
topology: v5e:2x2
jax: 0.10.0
libtpu: 0.0.40
codegen_flags: <defaults>
</compile_context>

<pallas_src>
import functools

import jax
import jax.numpy as jnp
from jax.experimental import pallas as pl
from jax.experimental.pallas import tpu as pltpu

_BN_EPS = 1e-5
_LANE = 128
_SUBLANE_BF16 = 16   # bf16 vreg holds [16, 128]; activations feed the MXU as bf16


def _pad_to(n, m):
    return ((n + m - 1) // m) * m


def _vmem_capacity_bytes():
    try:
        return int(pltpu.get_tpu_info().vmem_capacity_bytes)
    except Exception:
        return 64 * 1024 * 1024   # conservative default: v7x per-TC VMEM


def _lane_multiple(dim):
    """v6e/v7x MXU is 2x256x256: pad large dims to 256 so operands fill the
    systolic array.  Keep 128 for small dims and on v5-and-older chips."""
    if dim < 192:
        return _LANE
    try:
        kind = jax.devices()[0].device_kind.lower()
    except Exception:
        return _LANE
    if any(v in kind for v in ("v2", "v3", "v4", "v5")):
        return _LANE
    return 256


# ---------------------------------------------------------------------------
# Fused whole-MLP kernel (all weights VMEM-resident; optional batch grid)
# ---------------------------------------------------------------------------
def _fused_mlp_kernel(*refs, n_lin, batch_norm, real_b, padded_b):
    """refs = (x, <per-layer params...>, out).

    Per-layer params: (w, gamma, beta) when batch_norm else (w, b).
    Weights are [K_pad, N_pad] bf16; vector params are [1, N_pad] f32.
    Entire epilogue stays in f32 (v5e has no bf16 VPU/EUP).
    """
    x_ref = refs[0]
    o_ref = refs[-1]
    param_refs = refs[1:-1]

    need_mask = batch_norm and (real_b != padded_b)
    if need_mask:
        row_ids = jax.lax.broadcasted_iota(jnp.int32, (padded_b, 1), 0)
        row_mask = (row_ids < real_b).astype(jnp.float32)
    inv_b = 1.0 / real_b

    h = x_ref[...].astype(jnp.bfloat16)     # MXU inputs in bf16
    idx = 0
    y = None
    for layer in range(n_lin):
        if batch_norm:
            w_ref, g_ref, beta_ref = param_refs[idx:idx + 3]
            idx += 3
        else:
            w_ref, b_ref = param_refs[idx:idx + 2]
            idx += 2

        # MXU matmul, f32 accumulation.
        y = jnp.dot(h, w_ref[...], preferred_element_type=jnp.float32)

        if batch_norm:
            # One-pass batch statistics.  Padded rows are exactly zero on
            # layer 0 (zero-padded input), so the mask is only needed on
            # layers >= 1 where the previous affine made them nonzero.
            if need_mask and layer > 0:
                y_stats = y * row_mask
            else:
                y_stats = y
            s1 = jnp.sum(y_stats, axis=0, keepdims=True)
            s2 = jnp.sum(y_stats * y_stats, axis=0, keepdims=True)
            mean = s1 * inv_b
            var = jnp.maximum(s2 * inv_b - mean * mean, 0.0)
            # Folded BN affine: rsqrt on the EUP, 2 VPU ops per element.
            scale = g_ref[...] * jax.lax.rsqrt(var + _BN_EPS)
            shift = beta_ref[...] - mean * scale
            y = y * scale + shift
        else:
            y = y + b_ref[...]

        y = jnp.maximum(y, 0.0)              # ReLU in f32
        h = y.astype(jnp.bfloat16)           # next layer's MXU input

    o_ref[...] = y.astype(o_ref.dtype)


def _fused_mlp_call(x_pad, layers, batch_norm, real_b, batch_tiles):
    n_lin = len(layers)
    args = [x_pad]
    for layer in layers:
        if batch_norm:
            args += [layer["w"], layer["gamma"], layer["beta"]]
        else:
            args += [layer["w"], layer["b"]]

    b_pad, kp = x_pad.shape
    n_out_pad = layers[-1]["w"].shape[1]
    bt = b_pad // batch_tiles

    kernel = functools.partial(
        _fused_mlp_kernel, n_lin=n_lin, batch_norm=batch_norm,
        real_b=real_b, padded_b=bt)

    in_specs = [pl.BlockSpec((bt, kp), lambda i: (i, 0))]
    for layer in layers:
        w = layer["w"]
        in_specs.append(pl.BlockSpec(w.shape, lambda i: (0, 0)))
        np_ = w.shape[1]
        n_vec = 2 if batch_norm else 1
        for _ in range(n_vec):
            in_specs.append(pl.BlockSpec((1, np_), lambda i: (0, 0)))
    out_spec = pl.BlockSpec((bt, n_out_pad), lambda i: (i, 0))

    # Rough VMEM footprint (double-buffered blocks + activation temps).
    max_np = max(l["w"].shape[1] for l in layers)
    operand_bytes = sum(int(a.size) * a.dtype.itemsize for a in args)
    footprint = 2 * (operand_bytes + b_pad * n_out_pad * 4) + 8 * bt * max_np * 4
    cap = _vmem_capacity_bytes()
    vmem_limit = None
    if footprint > 16 * 1024 * 1024:
        vmem_limit = min(int(footprint * 1.25), int(cap * 0.9))

    return pl.pallas_call(
        kernel,
        out_shape=jax.ShapeDtypeStruct((b_pad, n_out_pad), jnp.float32),
        grid=(batch_tiles,),
        in_specs=in_specs,
        out_specs=out_spec,
        compiler_params=pltpu.CompilerParams(
            dimension_semantics=("parallel",),
            vmem_limit_bytes=vmem_limit),
    )(*args)


# ---------------------------------------------------------------------------
# Weight-streaming kernel (grid over layers, stacked [L, D, D] weights)
# ---------------------------------------------------------------------------
def _streamed_mlp_kernel(*refs, batch_norm, real_b, padded_b):
    """Grid axis 0 iterates layers; BlockSpec auto-pipelines layer i+1's
    weight tile (HBM->VMEM) while layer i's matmul runs.  The activation is
    carried across grid steps in a bf16 VMEM scratch."""
    if batch_norm:
        x_ref, w_ref, g_ref, beta_ref, o_ref, h_ref = refs
    else:
        x_ref, w_ref, b_ref, o_ref, h_ref = refs

    l = pl.program_id(0)
    n_lin = pl.num_programs(0)

    @pl.when(l == 0)
    def _():
        h_ref[...] = x_ref[...].astype(jnp.bfloat16)

    y = jnp.dot(h_ref[...], w_ref[0], preferred_element_type=jnp.float32)

    if batch_norm:
        inv_b = 1.0 / real_b
        if real_b != padded_b:
            row_ids = jax.lax.broadcasted_iota(jnp.int32, (padded_b, 1), 0)
            row_mask = (row_ids < real_b).astype(jnp.float32)
            y_stats = y * row_mask
        else:
            y_stats = y
        s1 = jnp.sum(y_stats, axis=0, keepdims=True)
        s2 = jnp.sum(y_stats * y_stats, axis=0, keepdims=True)
        mean = s1 * inv_b
        var = jnp.maximum(s2 * inv_b - mean * mean, 0.0)
        scale = g_ref[0] * jax.lax.rsqrt(var + _BN_EPS)
        shift = beta_ref[0] - mean * scale
        y = y * scale + shift
    else:
        y = y + b_ref[0]

    y = jnp.maximum(y, 0.0)
    h_ref[...] = y.astype(jnp.bfloat16)

    @pl.when(l == n_lin - 1)
    def _():
        o_ref[...] = y.astype(o_ref.dtype)


def _streamed_mlp_call(x_pad, stacked, batch_norm, real_b):
    b_pad, d = x_pad.shape
    n_lin = stacked["w"].shape[0]

    if batch_norm:
        args = [x_pad, stacked["w"], stacked["gamma"], stacked["beta"]]
    else:
        args = [x_pad, stacked["w"], stacked["b"]]

    kernel = functools.partial(
        _streamed_mlp_kernel, batch_norm=batch_norm,
        real_b=real_b, padded_b=b_pad)

    vec_spec = pl.BlockSpec((1, 1, d), lambda l: (l, 0, 0))
    in_specs = [pl.BlockSpec((b_pad, d), lambda l: (0, 0)),
                pl.BlockSpec((1, d, d), lambda l: (l, 0, 0))]
    in_specs += [vec_spec, vec_spec] if batch_norm else [vec_spec]

    # Per-step footprint: 2x weight tile (double-buffer) + x + out + scratch.
    footprint = (2 * d * d * 2            # weight double-buffer (bf16)
                 + 2 * b_pad * d * 4      # x (f32)
                 + 2 * b_pad * d * 4      # out (f32)
                 + b_pad * d * 2          # activation scratch (bf16)
                 + 6 * b_pad * d * 4      # epilogue temps
                 + 8 * d * 4)             # vector params
    cap = _vmem_capacity_bytes()
    vmem_limit = None
    if footprint > 16 * 1024 * 1024:
        vmem_limit = min(int(footprint * 1.25), int(cap * 0.9))

    return pl.pallas_call(
        kernel,
        out_shape=jax.ShapeDtypeStruct((b_pad, d), jnp.float32),
        grid=(n_lin,),
        in_specs=in_specs,
        out_specs=pl.BlockSpec((b_pad, d), lambda l: (0, 0)),
        scratch_shapes=[pltpu.VMEM((b_pad, d), jnp.bfloat16)],
        compiler_params=pltpu.CompilerParams(
            dimension_semantics=("arbitrary",),
            vmem_limit_bytes=vmem_limit),
    )(*args)


# ---------------------------------------------------------------------------
# Parameter construction / preparation
# ---------------------------------------------------------------------------
def init_mlp_params(key, n_layers, input_dim, hidden_dim, output_dim, batch_norm):
    """PyTorch-style init.  Weights stored [in_dim, out_dim] (transpose of nn.Linear)."""
    if n_layers < 3:
        raise Exception("Number of layers must be >= 3")
    params = []
    for i in range(n_layers - 1):
        if i == 0:
            fan_in, fan_out = input_dim, hidden_dim
        elif i < n_layers - 2:
            fan_in, fan_out = hidden_dim, hidden_dim
        else:
            fan_in, fan_out = hidden_dim, output_dim
        key, kw, kb = jax.random.split(key, 3)
        bound = 1.0 / (fan_in ** 0.5)
        w = jax.random.uniform(kw, (fan_in, fan_out), jnp.float32, -bound, bound)
        b = jax.random.uniform(kb, (1, fan_out), jnp.float32, -bound, bound)
        layer = {"w": w, "b": b}
        if batch_norm:
            layer["gamma"] = jnp.ones((1, fan_out), jnp.float32)
            layer["beta"] = jnp.zeros((1, fan_out), jnp.float32)
        params.append(layer)
    return params


def prepare_params(params, batch_norm):
    """Pad feature dims to lane multiples, cast weights to bf16, drop bias on
    BN layers (exactly cancelled by the batch-mean subtraction)."""
    layers = []
    for layer in params:
        k, n = layer["w"].shape
        kp = _pad_to(k, _lane_multiple(k))
        np_ = _pad_to(n, _lane_multiple(n))
        w = jnp.zeros((kp, np_), jnp.float32).at[:k, :n].set(layer["w"])
        entry = {"w": w.astype(jnp.bfloat16)}
        if batch_norm:
            entry["gamma"] = jnp.ones((1, np_), jnp.float32).at[:, :n].set(layer["gamma"])
            entry["beta"] = jnp.zeros((1, np_), jnp.float32).at[:, :n].set(layer["beta"])
        else:
            entry["b"] = jnp.zeros((1, np_), jnp.float32).at[:, :n].set(layer["b"])
        layers.append(entry)
    return {"layers": layers, "stacked": None, "batch_norm": batch_norm}


def _stack_params(layers, batch_norm):
    """Stack padded per-layer params into [L, Dmax, Dmax] / [L, 1, Dmax] for
    the layer-streamed kernel.  Zero padding is exact."""
    d = 0
    for layer in layers:
        d = max(d, layer["w"].shape[0], layer["w"].shape[1])
    n_lin = len(layers)
    w = jnp.zeros((n_lin, d, d), jnp.bfloat16)
    if batch_norm:
        gamma = jnp.ones((n_lin, 1, d), jnp.float32)
        beta = jnp.zeros((n_lin, 1, d), jnp.float32)
    else:
        bias = jnp.zeros((n_lin, 1, d), jnp.float32)
    for i, layer in enumerate(layers):
        k, n = layer["w"].shape
        w = w.at[i, :k, :n].set(layer["w"])
        if batch_norm:
            gamma = gamma.at[i, :, :n].set(layer["gamma"])
            beta = beta.at[i, :, :n].set(layer["beta"])
        else:
            bias = bias.at[i, :, :n].set(layer["b"])
    stacked = {"w": w}
    if batch_norm:
        stacked["gamma"], stacked["beta"] = gamma, beta
    else:
        stacked["b"] = bias
    return stacked


def _should_stream(layers, b_pad):
    """Stream weights (grid over layers) when the fully-fused footprint would
    not comfortably fit this generation's VMEM (v7x: 64 MiB/TC)."""
    cap = _vmem_capacity_bytes()
    weight_bytes = sum(int(l["w"].size) * 2 for l in layers)
    max_dim = max(max(l["w"].shape) for l in layers)
    act_bytes = 8 * b_pad * max_dim * 4
    footprint = 2 * weight_bytes + act_bytes
    return footprint > int(cap * 0.7)


# ---------------------------------------------------------------------------
# Forward
# ---------------------------------------------------------------------------
@functools.partial(jax.jit, static_argnames=("batch_norm", "output_dim"))
def _fused_forward(layers, x, batch_norm, output_dim):
    b, k = x.shape
    kp = layers[0]["w"].shape[0]
    bp = _pad_to(b, _SUBLANE_BF16)
    # TODO(synk): for very large inputs, avoid this wrapper-side pad (extra
    # HBM copy of x) by DMA'ing x into a zero-filled VMEM scratch in-kernel.
    x_pad = jnp.zeros((bp, kp), jnp.float32).at[:b, :k].set(x)

    batch_tiles = 1
    if not batch_norm:
        # Split the batch across "parallel" grid steps (v7x: both TensorCores)
        # when it is big enough; BN needs the whole batch for the statistics.
        for cand in (8, 4, 2):
            if bp % (cand * _SUBLANE_BF16) == 0 and bp // cand >= 64:
                batch_tiles = cand
                break

    out_pad = _fused_mlp_call(x_pad, layers, batch_norm, real_b=b,
                              batch_tiles=batch_tiles)
    return out_pad[:b, :output_dim]


@functools.partial(jax.jit, static_argnames=("batch_norm", "output_dim"))
def _stream_forward(stacked, x, batch_norm, output_dim):
    b, k = x.shape
    d = stacked["w"].shape[1]
    bp = _pad_to(b, _SUBLANE_BF16)
    x_pad = jnp.zeros((bp, d), jnp.float32).at[:b, :k].set(x)
    out_pad = _streamed_mlp_call(x_pad, stacked, batch_norm, real_b=b)
    return out_pad[:b, :output_dim]


def mlp_forward(prepped, x, output_dim, force_stream=None):
    batch_norm = prepped["batch_norm"]
    layers = prepped["layers"]
    bp = _pad_to(x.shape[0], _SUBLANE_BF16)
    use_stream = force_stream if force_stream is not None else _should_stream(layers, bp)
    if use_stream:
        if prepped["stacked"] is None:
            prepped["stacked"] = _stack_params(layers, batch_norm)
        return _stream_forward(prepped["stacked"], x,
                               batch_norm=batch_norm, output_dim=output_dim)
    return _fused_forward(layers, x, batch_norm=batch_norm, output_dim=output_dim)


# ---------------------------------------------------------------------------
# References for correctness checking
# ---------------------------------------------------------------------------
def _mimic_reference(layers, x, batch_norm, output_dim):
    """Plain-JAX replica of the exact kernel math (padding, bf16 matmul,
    one-pass masked stats, folded BN affine)."""
    b, k = x.shape
    kp = layers[0]["w"].shape[0]
    bp = _pad_to(b, _SUBLANE_BF16)
    h = jnp.zeros((bp, kp), jnp.float32).at[:b, :k].set(x)
    mask = (jnp.arange(bp)[:, None] < b).astype(jnp.float32)
    y = None
    for i, layer in enumerate(layers):
        y = jnp.dot(h.astype(jnp.bfloat16), layer["w"],
                    preferred_element_type=jnp.float32)
        if batch_norm:
            y_stats = y * mask if (b != bp and i > 0) else y
            mean = jnp.sum(y_stats, axis=0, keepdims=True) / b
            var = jnp.maximum(
                jnp.sum(y_stats * y_stats, axis=0, keepdims=True) / b - mean * mean, 0.0)
            scale = layer["gamma"] * jax.lax.rsqrt(var + _BN_EPS)
            y = y * scale + (layer["beta"] - mean * scale)
        else:
            y = y + layer["b"]
        y = jnp.maximum(y, 0.0)
        h = y
    return y[:b, :output_dim]


def _torch_semantics_reference(params, x, batch_norm):
    """Full-f32 reference matching the PyTorch module (Linear bias included)."""
    for layer in params:
        y = x @ layer["w"] + layer["b"]
        if batch_norm:
            mean = jnp.mean(y, axis=0, keepdims=True)
            var = jnp.mean((y - mean) ** 2, axis=0, keepdims=True)
            y = (y - mean) / jnp.sqrt(var + _BN_EPS)
            y = y * layer["gamma"] + layer["beta"]
        x = jnp.maximum(y, 0.0)
    return x


if __name__ == "__main__":
    n_layers, input_dim, hidden_dim, output_dim = 4, 16, 32, 8
    batch = 8

    key = jax.random.PRNGKey(0)
    key, kx = jax.random.split(key)
    x = jax.random.normal(kx, (batch, input_dim), jnp.float32)

    for batch_norm in (True, False):
        params = init_mlp_params(key, n_layers, input_dim, hidden_dim,
                                 output_dim, batch_norm)
        prepped = prepare_params(params, batch_norm)

        mimic = _mimic_reference(prepped["layers"], x, batch_norm, output_dim)
        ref = _torch_semantics_reference(params, x, batch_norm)
        loose_tol = 0.15 if batch_norm else 0.05

        # Exercise both the fully fused path and the weight-streaming path.
        for force_stream in (False, True):
            out = jax.block_until_ready(
                mlp_forward(prepped, x, output_dim, force_stream=force_stream))
            assert out.shape == (batch, output_dim)
            # Tight check against the exact math the kernel implements.
            assert jnp.allclose(out, mimic, atol=3e-3, rtol=3e-3), (
                batch_norm, force_stream, float(jnp.max(jnp.abs(out - mimic))))
            # Loose check against the full-f32 PyTorch-semantics reference.
            assert jnp.allclose(out, ref, atol=loose_tol, rtol=loose_tol), (
                batch_norm, force_stream, float(jnp.max(jnp.abs(out - ref))))

    # Exercise the batch-tiled ("parallel" grid over batch) fused path (no BN).
    xb = jax.random.normal(jax.random.PRNGKey(1), (128, input_dim), jnp.float32)
    params = init_mlp_params(key, n_layers, input_dim, hidden_dim, output_dim, False)
    prepped = prepare_params(params, False)
    out = jax.block_until_ready(mlp_forward(prepped, xb, output_dim, force_stream=False))
    mimic = _mimic_reference(prepped["layers"], xb, False, output_dim)
    assert out.shape == (128, output_dim)
    assert jnp.allclose(out, mimic, atol=3e-3, rtol=3e-3), \
        float(jnp.max(jnp.abs(out - mimic)))

    print("KERNEL_OK")
</pallas_src>

<mosaic_0001>
module attributes {stable_mosaic.version = 11 : i64} {
  func.func @_fused_mlp_kernel(%arg0: i32, %arg1: memref<16x128xf32, #tpu.memory_space<vmem>>, %arg2: memref<128x128xbf16, #tpu.memory_space<vmem>>, %arg3: memref<1x128xf32, #tpu.memory_space<vmem>>, %arg4: memref<1x128xf32, #tpu.memory_space<vmem>>, %arg5: memref<128x128xbf16, #tpu.memory_space<vmem>>, %arg6: memref<1x128xf32, #tpu.memory_space<vmem>>, %arg7: memref<1x128xf32, #tpu.memory_space<vmem>>, %arg8: memref<128x128xbf16, #tpu.memory_space<vmem>>, %arg9: memref<1x128xf32, #tpu.memory_space<vmem>>, %arg10: memref<1x128xf32, #tpu.memory_space<vmem>>, %arg11: memref<16x128xf32, #tpu.memory_space<vmem>>) attributes {dimension_semantics = [#tpu.dimension_semantics<parallel>], iteration_bounds = array<i64: 1>, scalar_prefetch = 0 : i64, scratch_operands = 0 : i64, tpu.core_type = #tpu.core_type<tc>, window_params = [{transform_indices = @transform_0, window_bounds = array<i64: 16, 128>}, {pipeline_mode = #tpu.pipeline_mode<synchronous>, transform_indices = @transform_1, window_bounds = array<i64: 128, 128>}, {pipeline_mode = #tpu.pipeline_mode<synchronous>, transform_indices = @transform_2, window_bounds = array<i64: 1, 128>}, {pipeline_mode = #tpu.pipeline_mode<synchronous>, transform_indices = @transform_3, window_bounds = array<i64: 1, 128>}, {pipeline_mode = #tpu.pipeline_mode<synchronous>, transform_indices = @transform_4, window_bounds = array<i64: 128, 128>}, {pipeline_mode = #tpu.pipeline_mode<synchronous>, transform_indices = @transform_5, window_bounds = array<i64: 1, 128>}, {pipeline_mode = #tpu.pipeline_mode<synchronous>, transform_indices = @transform_6, window_bounds = array<i64: 1, 128>}, {pipeline_mode = #tpu.pipeline_mode<synchronous>, transform_indices = @transform_7, window_bounds = array<i64: 128, 128>}, {pipeline_mode = #tpu.pipeline_mode<synchronous>, transform_indices = @transform_8, window_bounds = array<i64: 1, 128>}, {pipeline_mode = #tpu.pipeline_mode<synchronous>, transform_indices = @transform_9, window_bounds = array<i64: 1, 128>}, {transform_indices = @transform_10, window_bounds = array<i64: 16, 128>}]} {
    %0 = tpu.iota {dimensions = array<i32: 0>} : vector<16x1xi32>
    %c8_i32 = arith.constant 8 : i32
    %1 = vector.broadcast %c8_i32 : i32 to vector<16x1xi32>
    %2 = arith.cmpi slt, %0, %1 : vector<16x1xi32>
    %3 = arith.extui %2 : vector<16x1xi1> to vector<16x1xi32>
    %4 = arith.sitofp %3 : vector<16x1xi32> to vector<16x1xf32>
    %c0 = arith.constant 0 : index
    %c0_0 = arith.constant 0 : index
    %5 = vector.load %arg1[%c0, %c0_0] : memref<16x128xf32, #tpu.memory_space<vmem>>, vector<16x128xf32>
    %6 = arith.truncf %5 : vector<16x128xf32> to vector<16x128xbf16>
    %c0_1 = arith.constant 0 : index
    %c0_2 = arith.constant 0 : index
    %7 = vector.load %arg2[%c0_1, %c0_2] : memref<128x128xbf16, #tpu.memory_space<vmem>>, vector<128x128xbf16>
    %cst = arith.constant dense<0.000000e+00> : vector<16x128xf32>
    %8 = tpu.matmul %6, %7, %cst {dimension_numbers = #tpu.dot_dimension_numbers<[1], [0], [0], [1], [0, 0, 1, 1], [], []>} : vector<16x128xbf16>, vector<128x128xbf16>, vector<16x128xf32> -> vector<16x128xf32>
    %cst_3 = arith.constant dense<0.000000e+00> : vector<128xf32>
    %9 = vector.multi_reduction <add>, %8, %cst_3 [0] : vector<16x128xf32> to vector<128xf32>
    %10 = vector.shape_cast %9 : vector<128xf32> to vector<1x128xf32>
    %11 = arith.mulf %8, %8 : vector<16x128xf32>
    %cst_4 = arith.constant dense<0.000000e+00> : vector<128xf32>
    %12 = vector.multi_reduction <add>, %11, %cst_4 [0] : vector<16x128xf32> to vector<128xf32>
    %13 = vector.shape_cast %12 : vector<128xf32> to vector<1x128xf32>
    %cst_5 = arith.constant 1.250000e-01 : f32
    %14 = vector.broadcast %cst_5 : f32 to vector<1x128xf32>
    %15 = arith.mulf %10, %14 : vector<1x128xf32>
    %cst_6 = arith.constant 1.250000e-01 : f32
    %16 = vector.broadcast %cst_6 : f32 to vector<1x128xf32>
    %17 = arith.mulf %13, %16 : vector<1x128xf32>
    %18 = arith.mulf %15, %15 : vector<1x128xf32>
    %19 = arith.subf %17, %18 : vector<1x128xf32>
    %cst_7 = arith.constant 0.000000e+00 : f32
    %20 = vector.broadcast %cst_7 : f32 to vector<1x128xf32>
    %21 = arith.maximumf %19, %20 : vector<1x128xf32>
    %c0_8 = arith.constant 0 : index
    %c0_9 = arith.constant 0 : index
    %22 = vector.load %arg3[%c0_8, %c0_9] : memref<1x128xf32, #tpu.memory_space<vmem>>, vector<1x128xf32>
    %cst_10 = arith.constant 9.99999974E-6 : f32
    %23 = vector.broadcast %cst_10 : f32 to vector<1x128xf32>
    %24 = arith.addf %21, %23 : vector<1x128xf32>
    %25 = math.rsqrt %24 : vector<1x128xf32>
    %26 = arith.mulf %22, %25 : vector<1x128xf32>
    %c0_11 = arith.constant 0 : index
    %c0_12 = arith.constant 0 : index
    %27 = vector.load %arg4[%c0_11, %c0_12] : memref<1x128xf32, #tpu.memory_space<vmem>>, vector<1x128xf32>
    %28 = arith.mulf %15, %26 : vector<1x128xf32>
    %29 = arith.subf %27, %28 : vector<1x128xf32>
    %30 = vector.broadcast %26 : vector<1x128xf32> to vector<16x128xf32>
    %31 = arith.mulf %8, %30 : vector<16x128xf32>
    %32 = vector.broadcast %29 : vector<1x128xf32> to vector<16x128xf32>
    %33 = arith.addf %31, %32 : vector<16x128xf32>
    %cst_13 = arith.constant 0.000000e+00 : f32
    %34 = vector.broadcast %cst_13 : f32 to vector<16x128xf32>
    %35 = arith.maximumf %33, %34 : vector<16x128xf32>
    %36 = arith.truncf %35 : vector<16x128xf32> to vector<16x128xbf16>
    %c0_14 = arith.constant 0 : index
    %c0_15 = arith.constant 0 : index
    %37 = vector.load %arg5[%c0_14, %c0_15] : memref<128x128xbf16, #tpu.memory_space<vmem>>, vector<128x128xbf16>
    %cst_16 = arith.constant dense<0.000000e+00> : vector<16x128xf32>
    %38 = tpu.matmul %36, %37, %cst_16 {dimension_numbers = #tpu.dot_dimension_numbers<[1], [0], [0], [1], [0, 0, 1, 1], [], []>} : vector<16x128xbf16>, vector<128x128xbf16>, vector<16x128xf32> -> vector<16x128xf32>
    %39 = vector.broadcast %4 : vector<16x1xf32> to vector<16x128xf32>
    %40 = arith.mulf %38, %39 : vector<16x128xf32>
    %cst_17 = arith.constant dense<0.000000e+00> : vector<128xf32>
    %41 = vector.multi_reduction <add>, %40, %cst_17 [0] : vector<16x128xf32> to vector<128xf32>
    %42 = vector.shape_cast %41 : vector<128xf32> to vector<1x128xf32>
    %43 = arith.mulf %40, %40 : vector<16x128xf32>
    %cst_18 = arith.constant dense<0.000000e+00> : vector<128xf32>
    %44 = vector.multi_reduction <add>, %43, %cst_18 [0] : vector<16x128xf32> to vector<128xf32>
    %45 = vector.shape_cast %44 : vector<128xf32> to vector<1x128xf32>
    %cst_19 = arith.constant 1.250000e-01 : f32
    %46 = vector.broadcast %cst_19 : f32 to vector<1x128xf32>
    %47 = arith.mulf %42, %46 : vector<1x128xf32>
    %cst_20 = arith.constant 1.250000e-01 : f32
    %48 = vector.broadcast %cst_20 : f32 to vector<1x128xf32>
    %49 = arith.mulf %45, %48 : vector<1x128xf32>
    %50 = arith.mulf %47, %47 : vector<1x128xf32>
    %51 = arith.subf %49, %50 : vector<1x128xf32>
    %cst_21 = arith.constant 0.000000e+00 : f32
    %52 = vector.broadcast %cst_21 : f32 to vector<1x128xf32>
    %53 = arith.maximumf %51, %52 : vector<1x128xf32>
    %c0_22 = arith.constant 0 : index
    %c0_23 = arith.constant 0 : index
    %54 = vector.load %arg6[%c0_22, %c0_23] : memref<1x128xf32, #tpu.memory_space<vmem>>, vector<1x128xf32>
    %cst_24 = arith.constant 9.99999974E-6 : f32
    %55 = vector.broadcast %cst_24 : f32 to vector<1x128xf32>
    %56 = arith.addf %53, %55 : vector<1x128xf32>
    %57 = math.rsqrt %56 : vector<1x128xf32>
    %58 = arith.mulf %54, %57 : vector<1x128xf32>
    %c0_25 = arith.constant 0 : index
    %c0_26 = arith.constant 0 : index
    %59 = vector.load %arg7[%c0_25, %c0_26] : memref<1x128xf32, #tpu.memory_space<vmem>>, vector<1x128xf32>
    %60 = arith.mulf %47, %58 : vector<1x128xf32>
    %61 = arith.subf %59, %60 : vector<1x128xf32>
    %62 = vector.broadcast %58 : vector<1x128xf32> to vector<16x128xf32>
    %63 = arith.mulf %38, %62 : vector<16x128xf32>
    %64 = vector.broadcast %61 : vector<1x128xf32> to vector<16x128xf32>
    %65 = arith.addf %63, %64 : vector<16x128xf32>
    %cst_27 = arith.constant 0.000000e+00 : f32
    %66 = vector.broadcast %cst_27 : f32 to vector<16x128xf32>
    %67 = arith.maximumf %65, %66 : vector<16x128xf32>
    %68 = arith.truncf %67 : vector<16x128xf32> to vector<16x128xbf16>
    %c0_28 = arith.constant 0 : index
    %c0_29 = arith.constant 0 : index
    %69 = vector.load %arg8[%c0_28, %c0_29] : memref<128x128xbf16, #tpu.memory_space<vmem>>, vector<128x128xbf16>
    %cst_30 = arith.constant dense<0.000000e+00> : vector<16x128xf32>
    %70 = tpu.matmul %68, %69, %cst_30 {dimension_numbers = #tpu.dot_dimension_numbers<[1], [0], [0], [1], [0, 0, 1, 1], [], []>} : vector<16x128xbf16>, vector<128x128xbf16>, vector<16x128xf32> -> vector<16x128xf32>
    %71 = vector.broadcast %4 : vector<16x1xf32> to vector<16x128xf32>
    %72 = arith.mulf %70, %71 : vector<16x128xf32>
    %cst_31 = arith.constant dense<0.000000e+00> : vector<128xf32>
    %73 = vector.multi_reduction <add>, %72, %cst_31 [0] : vector<16x128xf32> to vector<128xf32>
    %74 = vector.shape_cast %73 : vector<128xf32> to vector<1x128xf32>
    %75 = arith.mulf %72, %72 : vector<16x128xf32>
    %cst_32 = arith.constant dense<0.000000e+00> : vector<128xf32>
    %76 = vector.multi_reduction <add>, %75, %cst_32 [0] : vector<16x128xf32> to vector<128xf32>
    %77 = vector.shape_cast %76 : vector<128xf32> to vector<1x128xf32>
    %cst_33 = arith.constant 1.250000e-01 : f32
    %78 = vector.broadcast %cst_33 : f32 to vector<1x128xf32>
    %79 = arith.mulf %74, %78 : vector<1x128xf32>
    %cst_34 = arith.constant 1.250000e-01 : f32
    %80 = vector.broadcast %cst_34 : f32 to vector<1x128xf32>
    %81 = arith.mulf %77, %80 : vector<1x128xf32>
    %82 = arith.mulf %79, %79 : vector<1x128xf32>
    %83 = arith.subf %81, %82 : vector<1x128xf32>
    %cst_35 = arith.constant 0.000000e+00 : f32
    %84 = vector.broadcast %cst_35 : f32 to vector<1x128xf32>
    %85 = arith.maximumf %83, %84 : vector<1x128xf32>
    %c0_36 = arith.constant 0 : index
    %c0_37 = arith.constant 0 : index
    %86 = vector.load %arg9[%c0_36, %c0_37] : memref<1x128xf32, #tpu.memory_space<vmem>>, vector<1x128xf32>
    %cst_38 = arith.constant 9.99999974E-6 : f32
    %87 = vector.broadcast %cst_38 : f32 to vector<1x128xf32>
    %88 = arith.addf %85, %87 : vector<1x128xf32>
    %89 = math.rsqrt %88 : vector<1x128xf32>
    %90 = arith.mulf %86, %89 : vector<1x128xf32>
    %c0_39 = arith.constant 0 : index
    %c0_40 = arith.constant 0 : index
    %91 = vector.load %arg10[%c0_39, %c0_40] : memref<1x128xf32, #tpu.memory_space<vmem>>, vector<1x128xf32>
    %92 = arith.mulf %79, %90 : vector<1x128xf32>
    %93 = arith.subf %91, %92 : vector<1x128xf32>
    %94 = vector.broadcast %90 : vector<1x128xf32> to vector<16x128xf32>
    %95 = arith.mulf %70, %94 : vector<16x128xf32>
    %96 = vector.broadcast %93 : vector<1x128xf32> to vector<16x128xf32>
    %97 = arith.addf %95, %96 : vector<16x128xf32>
    %cst_41 = arith.constant 0.000000e+00 : f32
    %98 = vector.broadcast %cst_41 : f32 to vector<16x128xf32>
    %99 = arith.maximumf %97, %98 : vector<16x128xf32>
    %c0_42 = arith.constant 0 : index
    %c0_43 = arith.constant 0 : index
    %100 = vector.load %arg11[%c0_42, %c0_43] : memref<16x128xf32, #tpu.memory_space<vmem>>, vector<16x128xf32>
    tpu.vector_store %arg11[%c0_42, %c0_43], %99 {strides = array<i32>} : memref<16x128xf32, #tpu.memory_space<vmem>>, vector<16x128xf32>,
    return
  }
  func.func @transform_0(%arg0: i32) -> (i32, i32) {
    %c0_i32 = arith.constant 0 : i32
    %c0_i32_0 = arith.constant 0 : i32
    return %arg0, %c0_i32 : i32, i32
  }
  func.func @transform_1(%arg0: i32) -> (i32, i32) {
    %c0_i32 = arith.constant 0 : i32
    %c0_i32_0 = arith.constant 0 : i32
    %c0_i32_1 = arith.constant 0 : i32
    return %c0_i32, %c0_i32_0 : i32, i32
  }
  func.func @transform_2(%arg0: i32) -> (i32, i32) {
    %c0_i32 = arith.constant 0 : i32
    %c0_i32_0 = arith.constant 0 : i32
    %c0_i32_1 = arith.constant 0 : i32
    return %c0_i32, %c0_i32_0 : i32, i32
  }
  func.func @transform_3(%arg0: i32) -> (i32, i32) {
    %c0_i32 = arith.constant 0 : i32
    %c0_i32_0 = arith.constant 0 : i32
    %c0_i32_1 = arith.constant 0 : i32
    return %c0_i32, %c0_i32_0 : i32, i32
  }
  func.func @transform_4(%arg0: i32) -> (i32, i32) {
    %c0_i32 = arith.constant 0 : i32
    %c0_i32_0 = arith.constant 0 : i32
    %c0_i32_1 = arith.constant 0 : i32
    return %c0_i32, %c0_i32_0 : i32, i32
  }
  func.func @transform_5(%arg0: i32) -> (i32, i32) {
    %c0_i32 = arith.constant 0 : i32
    %c0_i32_0 = arith.constant 0 : i32
    %c0_i32_1 = arith.constant 0 : i32
    return %c0_i32, %c0_i32_0 : i32, i32
  }
  func.func @transform_6(%arg0: i32) -> (i32, i32) {
    %c0_i32 = arith.constant 0 : i32
    %c0_i32_0 = arith.constant 0 : i32
    %c0_i32_1 = arith.constant 0 : i32
    return %c0_i32, %c0_i32_0 : i32, i32
  }
  func.func @transform_7(%arg0: i32) -> (i32, i32) {
    %c0_i32 = arith.constant 0 : i32
    %c0_i32_0 = arith.constant 0 : i32
    %c0_i32_1 = arith.constant 0 : i32
    return %c0_i32, %c0_i32_0 : i32, i32
  }
  func.func @transform_8(%arg0: i32) -> (i32, i32) {
    %c0_i32 = arith.constant 0 : i32
    %c0_i32_0 = arith.constant 0 : i32
    %c0_i32_1 = arith.constant 0 : i32
    return %c0_i32, %c0_i32_0 : i32, i32
  }
  func.func @transform_9(%arg0: i32) -> (i32, i32) {
    %c0_i32 = arith.constant 0 : i32
    %c0_i32_0 = arith.constant 0 : i32
    %c0_i32_1 = arith.constant 0 : i32
    return %c0_i32, %c0_i32_0 : i32, i32
  }
  func.func @transform_10(%arg0: i32) -> (i32, i32) {
    %c0_i32 = arith.constant 0 : i32
    %c0_i32_0 = arith.constant 0 : i32
    return %arg0, %c0_i32 : i32, i32
  }
}

</mosaic_0001>

<llo_original>
// kernel: _fused_forward.1
$region0: #{_fused_forward.1}
  #allocation0 [shape = 'u32[]', space=smem, size = 0x4, offset = 0x4, fixed_abs, tag = 'smem constant byte address 0x4 - core index']
  #allocation1 [shape = 'u32[72,128]{1,0:T(1,128)}', space=vmem, size = 0x9000, scoped, tag = 'internal scratch']
  %s0 = inlined_call_operand.vmem [shape: f32[16,128], index: 0, kind: input, shape index: {}]
  %s1 = inlined_call_operand.hbm [shape: bf16[128,128], index: 1, kind: input, shape index: {}]
  %s2 = inlined_call_operand.vmem [shape: f32[1,128], index: 2, kind: input, shape index: {}]
  %s3 = inlined_call_operand.vmem [shape: f32[1,128], index: 3, kind: input, shape index: {}]
  %s4 = inlined_call_operand.hbm [shape: bf16[128,128], index: 4, kind: input, shape index: {}]
  %s5 = inlined_call_operand.vmem [shape: f32[1,128], index: 5, kind: input, shape index: {}]
  %s6 = inlined_call_operand.vmem [shape: f32[1,128], index: 6, kind: input, shape index: {}]
  %s7 = inlined_call_operand.hbm [shape: bf16[128,128], index: 7, kind: input, shape index: {}]
  %s8 = inlined_call_operand.vmem [shape: f32[1,128], index: 8, kind: input, shape index: {}]
  %s9 = inlined_call_operand.vmem [shape: f32[1,128], index: 9, kind: input, shape index: {}]
  %s10 = inlined_call_operand.vmem [shape: f32[16,128], index: 10, kind: output, shape index: {}]
  %s11 = sld [smem:[#allocation0]]
  $region62: #{_fused_forward.1} parent=0
    _
  %s13 = ssub.s32 1, %s11
  %s14 = scalar_select 0, %s13, %s11
  $region1: #{_fused_forward.1} parent=0
    #allocation2 [shape = 'u8[32768]{0}', space=vmem, size = 0x8000, scoped, tag = 'input window, operand 1, single buffered']
    #allocation3 [shape = 's32[1]{0}', space=sflag, size = 0x4, scoped, tag = 'scoped memory for _fused_forward.1']
    #allocation4 [shape = 'u8[32768]{0}', space=vmem, size = 0x8000, scoped, tag = 'input window, operand 4, single buffered']
    #allocation5 [shape = 's32[1]{0}', space=sflag, size = 0x4, scoped, tag = 'scoped memory for _fused_forward.1']
    #allocation6 [shape = 'u8[32768]{0}', space=vmem, size = 0x8000, scoped, tag = 'input window, operand 7, single buffered']
    %15 = vsyncpa [#allocation3], 0
    %16 = vsyncpa [#allocation5], 0
    // Predicated region
    $region2: #{_fused_forward.1} parent=1 // pred_check
      _
    $region3: #{_fused_forward.1} parent=1 // pred_check_branch
      %18 = sbr.rel (0) target = $region5
    $region4: #{_fused_forward.1} parent=1 // pred_region
      _
    $region5: #{_fused_forward.1} parent=1 // pred_fallthru
      _
    // Predicated region
    $region6: #{_fused_forward.1} parent=1 // pred_check
      _
    $region7: #{_fused_forward.1} parent=1 // pred_check_branch
      %20 = sbr.rel (0) target = $region9
    $region8: #{_fused_forward.1} parent=1 // pred_region
      %22 = vsyncadd [#allocation3], 0
      %s23 = sshll.u32 %s1, 4
      %s24 = int_to_ptr.hbm [resolvable:$true] %s23
      %s25 = sshll.u32 [#allocation2], 4
      %s26 = int_to_ptr.vmem [resolvable:$true] %s25
      %31 = dma.hbm_to_vmem [thread:$0]  %s24, 1024, %s26, [#allocation3], 64, 64, 4
    $region9: #{_fused_forward.1} parent=1 // pred_fallthru
      _
    // Predicated region
    $region10: #{_fused_forward.1} parent=1 // pred_check
      _
    $region11: #{_fused_forward.1} parent=1 // pred_check_branch
      %33 = sbr.rel (0) target = $region13
    $region12: #{_fused_forward.1} parent=1 // pred_region
      _
    $region13: #{_fused_forward.1} parent=1 // pred_fallthru
      _
    // Predicated region
    $region14: #{_fused_forward.1} parent=1 // pred_check
      _
    $region15: #{_fused_forward.1} parent=1 // pred_check_branch
      %35 = sbr.rel (0) target = $region17
    $region16: #{_fused_forward.1} parent=1 // pred_region
      _
    $region17: #{_fused_forward.1} parent=1 // pred_fallthru
      _
    // Predicated region
    $region18: #{_fused_forward.1} parent=1 // pred_check
      _
    $region19: #{_fused_forward.1} parent=1 // pred_check_branch
      %37 = sbr.rel (0) target = $region21
    $region20: #{_fused_forward.1} parent=1 // pred_region
      %39 = vsyncadd [#allocation5], 0
      %s40 = sshll.u32 %s4, 4
      %s41 = int_to_ptr.hbm [resolvable:$true] %s40
      %s42 = sshll.u32 [#allocation4], 4
      %s43 = int_to_ptr.vmem [resolvable:$true] %s42
      %48 = dma.hbm_to_vmem [thread:$0]  %s41, 1024, %s43, [#allocation5], 64, 64, 4
    $region21: #{_fused_forward.1} parent=1 // pred_fallthru
      _
    // Predicated region
    $region22: #{_fused_forward.1} parent=1 // pred_check
      _
    $region23: #{_fused_forward.1} parent=1 // pred_check_branch
      %50 = sbr.rel (0) target = $region25
    $region24: #{_fused_forward.1} parent=1 // pred_region
      _
    $region25: #{_fused_forward.1} parent=1 // pred_fallthru
      _
    // Predicated region
    $region26: #{_fused_forward.1} parent=1 // pred_check
      _
    $region27: #{_fused_forward.1} parent=1 // pred_check_branch
      %52 = sbr.rel (0) target = $region29
    $region28: #{_fused_forward.1} parent=1 // pred_region
      _
    $region29: #{_fused_forward.1} parent=1 // pred_fallthru
      _
    // Predicated region
    $region30: #{_fused_forward.1} parent=1 // pred_check
      _
    $region31: #{_fused_forward.1} parent=1 // pred_check_branch
      %54 = sbr.rel (0) target = $region33
    $region32: #{_fused_forward.1} parent=1 // pred_region
      %56 = vsyncadd [#allocation5], 0
      %s57 = sshll.u32 %s7, 4
      %s58 = int_to_ptr.hbm [resolvable:$true] %s57
      %s59 = sshll.u32 [#allocation6], 4
      %s60 = int_to_ptr.vmem [resolvable:$true] %s59
      %65 = dma.hbm_to_vmem [thread:$0]  %s58, 1024, %s60, [#allocation5], 64, 64, 4
    $region33: #{_fused_forward.1} parent=1 // pred_fallthru
      _
    // Predicated region
    $region34: #{_fused_forward.1} parent=1 // pred_check
      _
    $region35: #{_fused_forward.1} parent=1 // pred_check_branch
      %67 = sbr.rel (0) target = $region37
    $region36: #{_fused_forward.1} parent=1 // pred_region
      _
    $region37: #{_fused_forward.1} parent=1 // pred_fallthru
      _
    // Predicated region
    $region38: #{_fused_forward.1} parent=1 // pred_check
      _
    $region39: #{_fused_forward.1} parent=1 // pred_check_branch
      %69 = sbr.rel (0) target = $region41
    $region40: #{_fused_forward.1} parent=1 // pred_region
      _
    $region41: #{_fused_forward.1} parent=1 // pred_fallthru
      _
    // Predicated region
    $region42: #{_fused_forward.1} parent=1 // pred_check
      _
    $region43: #{_fused_forward.1} parent=1 // pred_check_branch
      %71 = sbr.rel (0) target = $region45
    $region44: #{_fused_forward.1} parent=1 // pred_region
      %73 = dma.done [#allocation3], 1024
    $region45: #{_fused_forward.1} parent=1 // pred_fallthru
      _
    // Predicated region
    $region46: #{_fused_forward.1} parent=1 // pred_check
      _
    $region47: #{_fused_forward.1} parent=1 // pred_check_branch
      %75 = sbr.rel (0) target = $region49
    $region48: #{_fused_forward.1} parent=1 // pred_region
      %77 = dma.done [#allocation5], 1024
    $region49: #{_fused_forward.1} parent=1 // pred_fallthru
      _
    // Predicated region
    $region50: #{_fused_forward.1} parent=1 // pred_check
      _
    $region51: #{_fused_forward.1} parent=1 // pred_check_branch
      %79 = sbr.rel (0) target = $region53
    $region52: #{_fused_forward.1} parent=1 // pred_region
      %81 = dma.done [#allocation5], 1024
    $region53: #{_fused_forward.1} parent=1 // pred_fallthru
      _
    %v82 = vlaneseq
    %v83 = vshrl.u32 %v82, 7
    %v84 = vadd.s32 %v83, 8
    %vm85 = vcmp.lt.s32.totalorder %v83, 8
    %vm86 = vcmp.lt.s32.totalorder %v84, 8
    %v87 = vsel %vm85, 1, 0
    %v88 = vsel %vm86, 1, 0
    %v89 = vcvt.s32.f32 %v87
    %v90 = vcvt.s32.f32 %v88
    %v91 = vld [vmem:[%s0] sm:$0xff]
    %v92 = vld [vmem:[%s0 + $0x8] sm:$0xff]
    %v93 = vpack.c.bf16 %v92, %v91
    %v94 = vld [vmem:[#allocation2] sm:$0xf]
    %v95 = vld [vmem:[#allocation2 + $0x4] sm:$0xf]
    %v96 = vld [vmem:[#allocation2 + $0x8] sm:$0xf]
    %v97 = vld [vmem:[#allocation2 + $0xc] sm:$0xf]
    %v98 = vld [vmem:[#allocation2 + $0x10] sm:$0xf]
    %v99 = vld [vmem:[#allocation2 + $0x14] sm:$0xf]
    %v100 = vld [vmem:[#allocation2 + $0x18] sm:$0xf]
    %v101 = vld [vmem:[#allocation2 + $0x1c] sm:$0xf]
    %v102 = vld [vmem:[#allocation2 + $0x20] sm:$0xf]
    %v103 = vld [vmem:[#allocation2 + $0x24] sm:$0xf]
    %v104 = vld [vmem:[#allocation2 + $0x28] sm:$0xf]
    %v105 = vld [vmem:[#allocation2 + $0x2c] sm:$0xf]
    %v106 = vld [vmem:[#allocation2 + $0x30] sm:$0xf]
    %v107 = vld [vmem:[#allocation2 + $0x34] sm:$0xf]
    %v108 = vld [vmem:[#allocation2 + $0x38] sm:$0xf]
    %v109 = vld [vmem:[#allocation2 + $0x3c] sm:$0xf]
    %v126 = vunpack.c.l.b16 %v94
    %v127 = vunpack.c.l.b16 %v95
    %v128 = vunpack.c.l.b16 %v96
    %v129 = vunpack.c.l.b16 %v97
    %v130 = vunpack.c.l.b16 %v98
    %v131 = vunpack.c.l.b16 %v99
    %v132 = vunpack.c.l.b16 %v100
    %v133 = vunpack.c.l.b16 %v101
    %v134 = vunpack.c.l.b16 %v102
    %v135 = vunpack.c.l.b16 %v103
    %v136 = vunpack.c.l.b16 %v104
    %v137 = vunpack.c.l.b16 %v105
    %v138 = vunpack.c.l.b16 %v106
    %v139 = vunpack.c.l.b16 %v107
    %v140 = vunpack.c.l.b16 %v108
    %v141 = vunpack.c.l.b16 %v109
    %v142 = vpack.c.b16 %v127, %v126
    %v143 = vpack.c.b16 %v129, %v128
    %v144 = vpack.c.b16 %v131, %v130
    %v145 = vpack.c.b16 %v133, %v132
    %v146 = vpack.c.b16 %v135, %v134
    %v147 = vpack.c.b16 %v137, %v136
    %v148 = vpack.c.b16 %v139, %v138
    %v149 = vpack.c.b16 %v141, %v140
    %158 = vmatpush.bf16.msra.mxu0 %v149
    %159 = vmatpush.bf16.msra.mxu0 %v148
    %160 = vmatpush.bf16.msra.mxu0 %v147
    %161 = vmatpush.bf16.msra.mxu0 %v146
    %162 = vmatpush.bf16.msra.mxu0 %v145
    %163 = vmatpush.bf16.msra.mxu0 %v144
    %164 = vmatpush.bf16.msra.mxu0 %v143
    %165 = vmatpush.bf16.msra.mxu0 %v142
    %166 = vmatmul.bf16.gmra.mxu0 %v93
    %v167 = vpop.f32.mrf.mxu0
    %v168 = vadd.f32 0.0, %v167
    %v169 = vpop.f32.mrf.mxu0
    %v170 = vadd.f32 0.0, %v169
    %171 = vdwg.mxu0
    %v172 = vadd.f32 %v168, %v170
    %v173 = vrot.slane %v172, 4
    %v174 = vadd.f32 %v172, %v173
    %v175 = vrot.slane %v174, 2
    %v176 = vadd.f32 %v174, %v175
    %v177 = vrot.slane %v176, 1
    %v178 = vadd.f32 %v176, %v177
    %v179 = vmul.f32 %v168, %v168
    %v180 = vmul.f32 %v170, %v170
    %v181 = vadd.f32 %v179, %v180
    %v182 = vrot.slane %v181, 4
    %v183 = vadd.f32 %v181, %v182
    %v184 = vrot.slane %v183, 2
    %v185 = vadd.f32 %v183, %v184
    %v186 = vrot.slane %v185, 1
    %v187 = vadd.f32 %v185, %v186
    %v188 = vmul.f32 %v178, 0.125
    %v189 = vmul.f32 %v187, 0.125
    %v190 = vmul.f32 %v188, %v188
    %v191 = vsub.f32 %v189, %v190
    %v192 = vmax.f32 %v191, 0.0
    %v193 = vld [vmem:[%s2] sm:$0x1]
    %v194 = vadd.f32 %v192, 1e-05
    %v195 = vrsqrt.pop %v194
    %v196 = vmul.f32 %v195, %v194
    %v197 = vmul.f32 %v196, %v195
    %v198 = vmul.f32 0.5, %v197
    %v199 = vsub.f32 1.5, %v198
    %v200 = vmul.f32 %v195, %v199
    %vm201 = vweird.f32 %v194
    %vm202 = vweird.f32 %v195
    %vm203 = vmor %vm201, %vm202
    %v204 = vsel %vm203, %v195, %v200
    %v205 = vmul.f32 %v193, %v204
    %v206 = vld [vmem:[%s3] sm:$0x1]
    %v207 = vmul.f32 %v188, %v205
    %v208 = vsub.f32 %v206, %v207
    %v210 = vperm.slane %v205, 0
    %v212 = vmul.f32 %v168, %v210
    %v213 = vmul.f32 %v170, %v210
    %v215 = vperm.slane %v208, 0
    %v217 = vadd.f32 %v212, %v215
    %v218 = vadd.f32 %v213, %v215
    %v219 = vmax.f32 %v217, 0.0
    %v220 = vmax.f32 %v218, 0.0
    %v221 = vpack.c.bf16 %v220, %v219
    %v222 = vld [vmem:[#allocation4] sm:$0xf]
    %v223 = vld [vmem:[#allocation4 + $0x4] sm:$0xf]
    %v224 = vld [vmem:[#allocation4 + $0x8] sm:$0xf]
    %v225 = vld [vmem:[#allocation4 + $0xc] sm:$0xf]
    %v226 = vld [vmem:[#allocation4 + $0x10] sm:$0xf]
    %v227 = vld [vmem:[#allocation4 + $0x14] sm:$0xf]
    %v228 = vld [vmem:[#allocation4 + $0x18] sm:$0xf]
    %v229 = vld [vmem:[#allocation4 + $0x1c] sm:$0xf]
    %v230 = vld [vmem:[#allocation4 + $0x20] sm:$0xf]
    %v231 = vld [vmem:[#allocation4 + $0x24] sm:$0xf]
    %v232 = vld [vmem:[#allocation4 + $0x28] sm:$0xf]
    %v233 = vld [vmem:[#allocation4 + $0x2c] sm:$0xf]
    %v234 = vld [vmem:[#allocation4 + $0x30] sm:$0xf]
    %v235 = vld [vmem:[#allocation4 + $0x34] sm:$0xf]
    %v236 = vld [vmem:[#allocation4 + $0x38] sm:$0xf]
    %v237 = vld [vmem:[#allocation4 + $0x3c] sm:$0xf]
    %v254 = vunpack.c.l.b16 %v222
    %v255 = vunpack.c.l.b16 %v223
    %v256 = vunpack.c.l.b16 %v224
    %v257 = vunpack.c.l.b16 %v225
    %v258 = vunpack.c.l.b16 %v226
    %v259 = vunpack.c.l.b16 %v227
    %v260 = vunpack.c.l.b16 %v228
    %v261 = vunpack.c.l.b16 %v229
    %v262 = vunpack.c.l.b16 %v230
    %v263 = vunpack.c.l.b16 %v231
    %v264 = vunpack.c.l.b16 %v232
    %v265 = vunpack.c.l.b16 %v233
    %v266 = vunpack.c.l.b16 %v234
    %v267 = vunpack.c.l.b16 %v235
    %v268 = vunpack.c.l.b16 %v236
    %v269 = vunpack.c.l.b16 %v237
    %v270 = vpack.c.b16 %v255, %v254
    %v271 = vpack.c.b16 %v257, %v256
    %v272 = vpack.c.b16 %v259, %v258
    %v273 = vpack.c.b16 %v261, %v260
    %v274 = vpack.c.b16 %v263, %v262
    %v275 = vpack.c.b16 %v265, %v264
    %v276 = vpack.c.b16 %v267, %v266
    %v277 = vpack.c.b16 %v269, %v268
    %286 = vmatpush.bf16.msra.mxu0 %v277
    %287 = vmatpush.bf16.msra.mxu0 %v276
    %288 = vmatpush.bf16.msra.mxu0 %v275
    %289 = vmatpush.bf16.msra.mxu0 %v274
    %290 = vmatpush.bf16.msra.mxu0 %v273
    %291 = vmatpush.bf16.msra.mxu0 %v272
    %292 = vmatpush.bf16.msra.mxu0 %v271
    %293 = vmatpush.bf16.msra.mxu0 %v270
    %294 = vmatmul.bf16.gmra.mxu0 %v221
    %v295 = vpop.f32.mrf.mxu0
    %v296 = vadd.f32 0.0, %v295
    %v297 = vpop.f32.mrf.mxu0
    %v298 = vadd.f32 0.0, %v297
    %299 = vdwg.mxu0
    %v300 = vmul.f32 %v296, %v89
    %v301 = vmul.f32 %v298, %v90
    %v302 = vadd.f32 %v300, %v301
    %v303 = vrot.slane %v302, 4
    %v304 = vadd.f32 %v302, %v303
    %v305 = vrot.slane %v304, 2
    %v306 = vadd.f32 %v304, %v305
    %v307 = vrot.slane %v306, 1
    %v308 = vadd.f32 %v306, %v307
    %v309 = vmul.f32 %v300, %v300
    %v310 = vmul.f32 %v301, %v301
    %v311 = vadd.f32 %v309, %v310
    %v312 = vrot.slane %v311, 4
    %v313 = vadd.f32 %v311, %v312
    %v314 = vrot.slane %v313, 2
    %v315 = vadd.f32 %v313, %v314
    %v316 = vrot.slane %v315, 1
    %v317 = vadd.f32 %v315, %v316
    %v318 = vmul.f32 %v308, 0.125
    %v319 = vmul.f32 %v317, 0.125
    %v320 = vmul.f32 %v318, %v318
    %v321 = vsub.f32 %v319, %v320
    %v322 = vmax.f32 %v321, 0.0
    %v323 = vld [vmem:[%s5] sm:$0x1]
    %v324 = vadd.f32 %v322, 1e-05
    %v325 = vrsqrt.pop %v324
    %v326 = vmul.f32 %v325, %v324
    %v327 = vmul.f32 %v326, %v325
    %v328 = vmul.f32 0.5, %v327
    %v329 = vsub.f32 1.5, %v328
    %v330 = vmul.f32 %v325, %v329
    %vm331 = vweird.f32 %v324
    %vm332 = vweird.f32 %v325
    %vm333 = vmor %vm331, %vm332
    %v334 = vsel %vm333, %v325, %v330
    %v335 = vmul.f32 %v323, %v334
    %v336 = vld [vmem:[%s6] sm:$0x1]
    %v337 = vmul.f32 %v318, %v335
    %v338 = vsub.f32 %v336, %v337
    %v340 = vperm.slane %v335, 0
    %v342 = vmul.f32 %v296, %v340
    %v343 = vmul.f32 %v298, %v340
    %v345 = vperm.slane %v338, 0
    %v347 = vadd.f32 %v342, %v345
    %v348 = vadd.f32 %v343, %v345
    %v349 = vmax.f32 %v347, 0.0
    %v350 = vmax.f32 %v348, 0.0
    %v351 = vpack.c.bf16 %v350, %v349
    %v352 = vld [vmem:[#allocation6] sm:$0xf]
    %v353 = vld [vmem:[#allocation6 + $0x4] sm:$0xf]
    %v354 = vld [vmem:[#allocation6 + $0x8] sm:$0xf]
    %v355 = vld [vmem:[#allocation6 + $0xc] sm:$0xf]
    %v356 = vld [vmem:[#allocation6 + $0x10] sm:$0xf]
    %v357 = vld [vmem:[#allocation6 + $0x14] sm:$0xf]
    %v358 = vld [vmem:[#allocation6 + $0x18] sm:$0xf]
    %v359 = vld [vmem:[#allocation6 + $0x1c] sm:$0xf]
    %v360 = vld [vmem:[#allocation6 + $0x20] sm:$0xf]
    %v361 = vld [vmem:[#allocation6 + $0x24] sm:$0xf]
    %v362 = vld [vmem:[#allocation6 + $0x28] sm:$0xf]
    %v363 = vld [vmem:[#allocation6 + $0x2c] sm:$0xf]
    %v364 = vld [vmem:[#allocation6 + $0x30] sm:$0xf]
    %v365 = vld [vmem:[#allocation6 + $0x34] sm:$0xf]
    %v366 = vld [vmem:[#allocation6 + $0x38] sm:$0xf]
    %v367 = vld [vmem:[#allocation6 + $0x3c] sm:$0xf]
    %v384 = vunpack.c.l.b16 %v352
    %v385 = vunpack.c.l.b16 %v353
    %v386 = vunpack.c.l.b16 %v354
    %v387 = vunpack.c.l.b16 %v355
    %v388 = vunpack.c.l.b16 %v356
    %v389 = vunpack.c.l.b16 %v357
    %v390 = vunpack.c.l.b16 %v358
    %v391 = vunpack.c.l.b16 %v359
    %v392 = vunpack.c.l.b16 %v360
    %v393 = vunpack.c.l.b16 %v361
    %v394 = vunpack.c.l.b16 %v362
    %v395 = vunpack.c.l.b16 %v363
    %v396 = vunpack.c.l.b16 %v364
    %v397 = vunpack.c.l.b16 %v365
    %v398 = vunpack.c.l.b16 %v366
    %v399 = vunpack.c.l.b16 %v367
    %v400 = vpack.c.b16 %v385, %v384
    %v401 = vpack.c.b16 %v387, %v386
    %v402 = vpack.c.b16 %v389, %v388
    %v403 = vpack.c.b16 %v391, %v390
    %v404 = vpack.c.b16 %v393, %v392
    %v405 = vpack.c.b16 %v395, %v394
    %v406 = vpack.c.b16 %v397, %v396
    %v407 = vpack.c.b16 %v399, %v398
    %416 = vmatpush.bf16.msra.mxu0 %v407
    %417 = vmatpush.bf16.msra.mxu0 %v406
    %418 = vmatpush.bf16.msra.mxu0 %v405
    %419 = vmatpush.bf16.msra.mxu0 %v404
    %420 = vmatpush.bf16.msra.mxu0 %v403
    %421 = vmatpush.bf16.msra.mxu0 %v402
    %422 = vmatpush.bf16.msra.mxu0 %v401
    %423 = vmatpush.bf16.msra.mxu0 %v400
    %424 = vmatmul.bf16.gmra.mxu0 %v351
    %v425 = vpop.f32.mrf.mxu0
    %v426 = vadd.f32 0.0, %v425
    %v427 = vpop.f32.mrf.mxu0
    %v428 = vadd.f32 0.0, %v427
    %429 = vdwg.mxu0
    %v430 = vmul.f32 %v426, %v89
    %v431 = vmul.f32 %v428, %v90
    %v432 = vadd.f32 %v430, %v431
    %v433 = vrot.slane %v432, 4
    %v434 = vadd.f32 %v432, %v433
    %v435 = vrot.slane %v434, 2
    %v436 = vadd.f32 %v434, %v435
    %v437 = vrot.slane %v436, 1
    %v438 = vadd.f32 %v436, %v437
    %v439 = vmul.f32 %v430, %v430
    %v440 = vmul.f32 %v431, %v431
    %v441 = vadd.f32 %v439, %v440
    %v442 = vrot.slane %v441, 4
    %v443 = vadd.f32 %v441, %v442
    %v444 = vrot.slane %v443, 2
    %v445 = vadd.f32 %v443, %v444
    %v446 = vrot.slane %v445, 1
    %v447 = vadd.f32 %v445, %v446
    %v448 = vmul.f32 %v438, 0.125
    %v449 = vmul.f32 %v447, 0.125
    %v450 = vmul.f32 %v448, %v448
    %v451 = vsub.f32 %v449, %v450
    %v452 = vmax.f32 %v451, 0.0
    %v453 = vld [vmem:[%s8] sm:$0x1]
    %v454 = vadd.f32 %v452, 1e-05
    %v455 = vrsqrt.pop %v454
    %v456 = vmul.f32 %v455, %v454
    %v457 = vmul.f32 %v456, %v455
    %v458 = vmul.f32 0.5, %v457
    %v459 = vsub.f32 1.5, %v458
    %v460 = vmul.f32 %v455, %v459
    %vm461 = vweird.f32 %v454
    %vm462 = vweird.f32 %v455
    %vm463 = vmor %vm461, %vm462
    %v464 = vsel %vm463, %v455, %v460
    %v465 = vmul.f32 %v453, %v464
    %v466 = vld [vmem:[%s9] sm:$0x1]
    %v467 = vmul.f32 %v448, %v465
    %v468 = vsub.f32 %v466, %v467
    %v470 = vperm.slane %v465, 0
    %v472 = vmul.f32 %v426, %v470
    %v473 = vmul.f32 %v428, %v470
    %v475 = vperm.slane %v468, 0
    %v477 = vadd.f32 %v472, %v475
    %v478 = vadd.f32 %v473, %v475
    %v479 = vmax.f32 %v477, 0.0
    %v480 = vmax.f32 %v478, 0.0
    %481 = vst [vmem:[%s10] sm:$0xff] %v479
    %482 = vst [vmem:[%s10 + $0x8] sm:$0xff] %v480
    // Predicated region
    $region54: #{_fused_forward.1} parent=1 // pred_check
      _
    $region55: #{_fused_forward.1} parent=1 // pred_check_branch
      %484 = sbr.rel (0) target = $region57
    $region56: #{_fused_forward.1} parent=1 // pred_region
      _
    $region57: #{_fused_forward.1} parent=1 // pred_fallthru
      _
    // Predicated region
    $region58: #{_fused_forward.1} parent=1 // pred_check
      _
    $region59: #{_fused_forward.1} parent=1 // pred_check_branch
      %486 = sbr.rel (0) target = $region61
    $region60: #{_fused_forward.1} parent=1 // pred_region
      _
    $region61: #{_fused_forward.1} parent=1 // pred_fallthru
      _
    %487 = vsyncpa [#allocation3], 1
    %488 = vsyncpa [#allocation5], 1

</llo_original>
